<compile_context>
chip_gen: v7x
topology: tpu7x:2x2x1
jax: 0.10.0
libtpu: 0.0.40
codegen_flags: <defaults>
</compile_context>

<pallas_src>
import jax
import jax.numpy as jnp
from jax.experimental import pallas as pl
from jax.experimental.pallas import tpu as pltpu

SEQ = 2         # sequence length
IN = 2          # LSTM input_size
H = 32          # LSTM hidden_size
GATES = 4 * H   # 128 -> one full sublane tile of gate rows
LANE = 128      # lane width (batch tile granularity in the transposed layout)


def _round_up(n, m):
    return (n + m - 1) // m * m


def net_kernel(x_ref, wbig_ref, whh_ref, consts_ref, o_ref):
    """One batch tile in batch-in-lanes layout.

    x_ref      : (SEQ*IN, TB)    x^T tile (rows 0..1 = x_t0 feats, rows 2..3 = x_t1)
    wbig_ref   : (2*4H, SEQ*IN)  block-diag [[W_ih, 0], [0, W_ih]], rows permuted [i,f,o,g]
    whh_ref    : (4H, H)         W_hh, rows permuted [i,f,o,g]
    consts_ref : (4H, 4)         col0 = b_ih+b_hh, col1 = gate input scale,
                                 col2 = gate output bias,
                                 col3 = [wlin_t0 (H), wlin_t1 (H), blin, 0...]
    o_ref      : (1, TB)         output row (lane-dense store)
    """
    xT = x_ref[...]                                    # (4, TB)
    consts = consts_ref[...]                           # (4H, 4)
    b      = consts[:, 0:1]                            # (4H, 1)
    gscale = consts[:, 1:2]                            # 0.5 on sigmoid rows, 1.0 on tanh rows
    gbias  = consts[:, 2:3]                            # 0.5 on sigmoid rows, 0.0 on tanh rows
    wpack  = consts[:, 3:4]                            # packed linear params

    # One fused MXU push for both timesteps' input contributions.
    big = jnp.dot(wbig_ref[...], xT,
                  preferred_element_type=jnp.float32)  # (2*4H, TB)

    # ---- t = 0 : h_prev = c_prev = 0  -> skip the recurrent matmul ----
    # sigmoid(x) = 0.5*tanh(x/2) + 0.5  -> one full-width tanh per gate slab.
    a0 = jnp.tanh((big[0:GATES] + b) * gscale) * gscale + gbias
    i0 = a0[0 * H:1 * H]
    o0 = a0[2 * H:3 * H]
    g0 = a0[3 * H:4 * H]
    c = i0 * g0                                        # f0 * c_prev == 0
    h0 = o0 * jnp.tanh(c)                              # (H, TB)

    # ---- t = 1 : recurrent matmul is a clean (4H, H) @ (H, TB) ----
    rec = jnp.dot(whh_ref[...], h0,
                  preferred_element_type=jnp.float32)  # (4H, TB)
    a1 = jnp.tanh((big[GATES:2 * GATES] + rec + b) * gscale) * gscale + gbias
    i1 = a1[0 * H:1 * H]
    f1 = a1[1 * H:2 * H]
    o1 = a1[2 * H:3 * H]
    g1 = a1[3 * H:4 * H]
    c = f1 * c + i1 * g1
    h1 = o1 * jnp.tanh(c)                              # (H, TB)

    # ---- head: VPU mul + sublane reduce; lane-dense (1, TB) store ----
    contrib = h0 * wpack[0:H] + h1 * wpack[H:2 * H]    # (H, TB)
    o_ref[...] = (jnp.sum(contrib, axis=0, keepdims=True)
                  + wpack[2 * H:2 * H + 1])            # + b_lin


def net_forward(x, params, *, tile_b=4096):
    """x: (B, SEQ, IN) float32 (batch_first, like PyTorch).  Returns (B, 1)."""
    B = x.shape[0]
    # Batch-in-lanes: (B, SEQ*IN) -> (SEQ*IN, B).  Cheap wrapper-side plumbing.
    xT = x.reshape(B, SEQ * IN).T.astype(jnp.float32)           # (4, B)

    # Gate-row permutation: PyTorch order [i, f, g, o] -> [i, f, o, g]
    # (sigmoid gates in rows 0..3H-1, tanh gate in rows 3H..4H-1).
    perm = jnp.concatenate([jnp.arange(0, 2 * H),
                            jnp.arange(3 * H, 4 * H),
                            jnp.arange(2 * H, 3 * H)])
    w_ih = params["w_ih"][perm].astype(jnp.float32)             # (4H, IN)
    w_hh = params["w_hh"][perm].astype(jnp.float32)             # (4H, H)
    bias = (params["b_ih"] + params["b_hh"])[perm].astype(jnp.float32)  # (4H,)

    # Block-diagonal fused input weight: [[W_ih, 0], [0, W_ih]]  -> (2*4H, SEQ*IN)
    zeros = jnp.zeros((GATES, IN), jnp.float32)
    w_big = jnp.concatenate(
        [jnp.concatenate([w_ih, zeros], axis=1),
         jnp.concatenate([zeros, w_ih], axis=1)], axis=0)       # (256, 4)

    # Gate activation scale/bias columns (sigmoid via tanh identity).
    gscale = jnp.concatenate([jnp.full((3 * H,), 0.5, jnp.float32),
                              jnp.ones((H,), jnp.float32)])
    gbias = jnp.concatenate([jnp.full((3 * H,), 0.5, jnp.float32),
                             jnp.zeros((H,), jnp.float32)])

    # Packed linear params: rows 0..H-1 = wlin(t=0), H..2H-1 = wlin(t=1), 2H = blin.
    wpack = jnp.zeros((GATES,), jnp.float32)
    wpack = wpack.at[:SEQ * H].set(params["w_lin"].reshape(-1).astype(jnp.float32))
    wpack = wpack.at[SEQ * H].set(params["b_lin"].reshape(()).astype(jnp.float32))

    consts = jnp.stack([bias, gscale, gbias, wpack], axis=1)    # (4H, 4)

    # Batch tile: multiple of 128 lanes; capped at ceil(B/2) so the parallel
    # grid axis has >= 2 steps for the v7x megacore whenever B > 128.
    two_step = _round_up(pl.cdiv(B, 2), LANE)
    TB = max(LANE, min(_round_up(tile_b, LANE), two_step))
    Bp = _round_up(B, TB)
    if Bp != B:
        xT = jnp.pad(xT, ((0, 0), (0, Bp - B)))

    out = pl.pallas_call(
        net_kernel,
        out_shape=jax.ShapeDtypeStruct((1, Bp), jnp.float32),
        grid=(Bp // TB,),
        in_specs=[
            pl.BlockSpec((SEQ * IN, TB), lambda i: (0, i)),      # x^T tile (dense DMA)
            pl.BlockSpec((2 * GATES, SEQ * IN), lambda i: (0, 0)),  # fused W (resident)
            pl.BlockSpec((GATES, H), lambda i: (0, 0)),          # W_hh (resident)
            pl.BlockSpec((GATES, 4), lambda i: (0, 0)),          # packed constants
        ],
        out_specs=pl.BlockSpec((1, TB), lambda i: (0, i)),
        compiler_params=pltpu.CompilerParams(
            dimension_semantics=("parallel",),
            vmem_limit_bytes=64 * 1024 * 1024),
    )(xT, w_big, w_hh, consts)

    return out[0, :B].reshape(B, 1)


def net_forward_ref(x, params):
    """Pure-JAX reference of the PyTorch forward (for verification)."""
    B = x.shape[0]
    h = jnp.zeros((B, H), jnp.float32)
    c = jnp.zeros((B, H), jnp.float32)
    b = params["b_ih"] + params["b_hh"]
    outs = []
    for t in range(SEQ):
        gates = x[:, t, :] @ params["w_ih"].T + h @ params["w_hh"].T + b
        i_g = jax.nn.sigmoid(gates[:, 0 * H:1 * H])
        f_g = jax.nn.sigmoid(gates[:, 1 * H:2 * H])
        g_g = jnp.tanh(gates[:, 2 * H:3 * H])
        o_g = jax.nn.sigmoid(gates[:, 3 * H:4 * H])
        c = f_g * c + i_g * g_g
        h = o_g * jnp.tanh(c)
        outs.append(h)
    feat = jnp.concatenate(outs, axis=-1)
    return feat @ params["w_lin"].T + params["b_lin"]


def init_params(key):
    """Deterministic params, shapes matching PyTorch nn.LSTM / nn.Linear."""
    k = 1.0 / jnp.sqrt(jnp.float32(H))
    keys = jax.random.split(key, 6)
    u = lambda kk, shape: jax.random.uniform(kk, shape, jnp.float32, -k, k)
    return {
        "w_ih": u(keys[0], (4 * H, IN)),        # LSTM weight_ih_l0
        "w_hh": u(keys[1], (4 * H, H)),         # LSTM weight_hh_l0
        "b_ih": u(keys[2], (4 * H,)),           # LSTM bias_ih_l0
        "b_hh": u(keys[3], (4 * H,)),           # LSTM bias_hh_l0
        "w_lin": u(keys[4], (1, SEQ * H)),      # Linear weight (1, 64)
        "b_lin": u(keys[5], (1,)),              # Linear bias
    }


if __name__ == "__main__":
    key = jax.random.PRNGKey(0)
    kx, kx2, kp = jax.random.split(key, 3)
    params = init_params(kp)

    # Case 1: small batch (padded up to one 128-lane tile).
    B = 8
    x = jax.random.normal(kx, (B, SEQ, IN), jnp.float32)
    out = jax.block_until_ready(net_forward(x, params))
    ref = net_forward_ref(x, params)
    assert out.shape == (B, 1)
    assert jnp.allclose(out, ref, atol=1e-4, rtol=1e-4), (
        f"mismatch (B=8): max abs err = {jnp.max(jnp.abs(out - ref))}")

    # Case 2: ragged batch (exercises the tail-padding path).
    B2 = 5
    x2 = jax.random.normal(kx2, (B2, SEQ, IN), jnp.float32)
    out2 = jax.block_until_ready(net_forward(x2, params))
    ref2 = net_forward_ref(x2, params)
    assert out2.shape == (B2, 1)
    assert jnp.allclose(out2, ref2, atol=1e-4, rtol=1e-4), (
        f"mismatch (B=5): max abs err = {jnp.max(jnp.abs(out2 - ref2))}")

    print("KERNEL_OK")
</pallas_src>

<mosaic_0001>
module attributes {stable_mosaic.version = 11 : i64} {
  func.func @net_kernel(%arg0: i32, %arg1: memref<4x128xf32, #tpu.memory_space<vmem>>, %arg2: memref<256x4xf32, #tpu.memory_space<vmem>>, %arg3: memref<128x32xf32, #tpu.memory_space<vmem>>, %arg4: memref<128x4xf32, #tpu.memory_space<vmem>>, %arg5: memref<1x128xf32, #tpu.memory_space<vmem>>) attributes {dimension_semantics = [#tpu.dimension_semantics<parallel>], iteration_bounds = array<i64: 1>, scalar_prefetch = 0 : i64, scratch_operands = 0 : i64, tpu.core_type = #tpu.core_type<tc>, window_params = [{transform_indices = @transform_0, window_bounds = array<i64: 4, 128>}, {pipeline_mode = #tpu.pipeline_mode<synchronous>, transform_indices = @transform_1, window_bounds = array<i64: 256, 4>}, {pipeline_mode = #tpu.pipeline_mode<synchronous>, transform_indices = @transform_2, window_bounds = array<i64: 128, 32>}, {pipeline_mode = #tpu.pipeline_mode<synchronous>, transform_indices = @transform_3, window_bounds = array<i64: 128, 4>}, {transform_indices = @transform_4, window_bounds = array<i64: 1, 128>}]} {
    %c0 = arith.constant 0 : index
    %c0_0 = arith.constant 0 : index
    %0 = vector.load %arg1[%c0, %c0_0] : memref<4x128xf32, #tpu.memory_space<vmem>>, vector<4x128xf32>
    %c0_1 = arith.constant 0 : index
    %c0_2 = arith.constant 0 : index
    %1 = vector.load %arg4[%c0_1, %c0_2] : memref<128x4xf32, #tpu.memory_space<vmem>>, vector<128x4xf32>
    %2 = vector.extract_strided_slice %1 {offsets = [0, 0], sizes = [128, 1], strides = [1, 1]} : vector<128x4xf32> to vector<128x1xf32>
    %3 = vector.extract_strided_slice %1 {offsets = [0, 1], sizes = [128, 1], strides = [1, 1]} : vector<128x4xf32> to vector<128x1xf32>
    %4 = vector.extract_strided_slice %1 {offsets = [0, 2], sizes = [128, 1], strides = [1, 1]} : vector<128x4xf32> to vector<128x1xf32>
    %5 = vector.extract_strided_slice %1 {offsets = [0, 3], sizes = [128, 1], strides = [1, 1]} : vector<128x4xf32> to vector<128x1xf32>
    %c0_3 = arith.constant 0 : index
    %c0_4 = arith.constant 0 : index
    %6 = vector.load %arg2[%c0_3, %c0_4] : memref<256x4xf32, #tpu.memory_space<vmem>>, vector<256x4xf32>
    %cst = arith.constant dense<0.000000e+00> : vector<256x128xf32>
    %7 = tpu.matmul %6, %0, %cst {dimension_numbers = #tpu.dot_dimension_numbers<[1], [0], [0], [1], [0, 0, 1, 1], [], []>} : vector<256x4xf32>, vector<4x128xf32>, vector<256x128xf32> -> vector<256x128xf32>
    %8 = vector.extract_strided_slice %7 {offsets = [0, 0], sizes = [128, 128], strides = [1, 1]} : vector<256x128xf32> to vector<128x128xf32>
    %9 = vector.broadcast %2 : vector<128x1xf32> to vector<128x128xf32>
    %10 = arith.addf %8, %9 : vector<128x128xf32>
    %11 = vector.broadcast %3 : vector<128x1xf32> to vector<128x128xf32>
    %12 = arith.mulf %10, %11 : vector<128x128xf32>
    %13 = math.tanh %12 : vector<128x128xf32>
    %14 = vector.broadcast %3 : vector<128x1xf32> to vector<128x128xf32>
    %15 = arith.mulf %13, %14 : vector<128x128xf32>
    %16 = vector.broadcast %4 : vector<128x1xf32> to vector<128x128xf32>
    %17 = arith.addf %15, %16 : vector<128x128xf32>
    %18 = vector.extract_strided_slice %17 {offsets = [0, 0], sizes = [32, 128], strides = [1, 1]} : vector<128x128xf32> to vector<32x128xf32>
    %19 = vector.extract_strided_slice %17 {offsets = [64, 0], sizes = [32, 128], strides = [1, 1]} : vector<128x128xf32> to vector<32x128xf32>
    %20 = vector.extract_strided_slice %17 {offsets = [96, 0], sizes = [32, 128], strides = [1, 1]} : vector<128x128xf32> to vector<32x128xf32>
    %21 = arith.mulf %18, %20 : vector<32x128xf32>
    %22 = math.tanh %21 : vector<32x128xf32>
    %23 = arith.mulf %19, %22 : vector<32x128xf32>
    %c0_5 = arith.constant 0 : index
    %c0_6 = arith.constant 0 : index
    %24 = vector.load %arg3[%c0_5, %c0_6] : memref<128x32xf32, #tpu.memory_space<vmem>>, vector<128x32xf32>
    %cst_7 = arith.constant dense<0.000000e+00> : vector<128x128xf32>
    %25 = tpu.matmul %24, %23, %cst_7 {dimension_numbers = #tpu.dot_dimension_numbers<[1], [0], [0], [1], [0, 0, 1, 1], [], []>} : vector<128x32xf32>, vector<32x128xf32>, vector<128x128xf32> -> vector<128x128xf32>
    %26 = vector.extract_strided_slice %7 {offsets = [128, 0], sizes = [128, 128], strides = [1, 1]} : vector<256x128xf32> to vector<128x128xf32>
    %27 = arith.addf %26, %25 : vector<128x128xf32>
    %28 = vector.broadcast %2 : vector<128x1xf32> to vector<128x128xf32>
    %29 = arith.addf %27, %28 : vector<128x128xf32>
    %30 = vector.broadcast %3 : vector<128x1xf32> to vector<128x128xf32>
    %31 = arith.mulf %29, %30 : vector<128x128xf32>
    %32 = math.tanh %31 : vector<128x128xf32>
    %33 = vector.broadcast %3 : vector<128x1xf32> to vector<128x128xf32>
    %34 = arith.mulf %32, %33 : vector<128x128xf32>
    %35 = vector.broadcast %4 : vector<128x1xf32> to vector<128x128xf32>
    %36 = arith.addf %34, %35 : vector<128x128xf32>
    %37 = vector.extract_strided_slice %36 {offsets = [0, 0], sizes = [32, 128], strides = [1, 1]} : vector<128x128xf32> to vector<32x128xf32>
    %38 = vector.extract_strided_slice %36 {offsets = [32, 0], sizes = [32, 128], strides = [1, 1]} : vector<128x128xf32> to vector<32x128xf32>
    %39 = vector.extract_strided_slice %36 {offsets = [64, 0], sizes = [32, 128], strides = [1, 1]} : vector<128x128xf32> to vector<32x128xf32>
    %40 = vector.extract_strided_slice %36 {offsets = [96, 0], sizes = [32, 128], strides = [1, 1]} : vector<128x128xf32> to vector<32x128xf32>
    %41 = arith.mulf %38, %21 : vector<32x128xf32>
    %42 = arith.mulf %37, %40 : vector<32x128xf32>
    %43 = arith.addf %41, %42 : vector<32x128xf32>
    %44 = math.tanh %43 : vector<32x128xf32>
    %45 = arith.mulf %39, %44 : vector<32x128xf32>
    %46 = vector.extract_strided_slice %5 {offsets = [0, 0], sizes = [32, 1], strides = [1, 1]} : vector<128x1xf32> to vector<32x1xf32>
    %47 = vector.broadcast %46 : vector<32x1xf32> to vector<32x128xf32>
    %48 = arith.mulf %23, %47 : vector<32x128xf32>
    %49 = vector.extract_strided_slice %5 {offsets = [32, 0], sizes = [32, 1], strides = [1, 1]} : vector<128x1xf32> to vector<32x1xf32>
    %50 = vector.broadcast %49 : vector<32x1xf32> to vector<32x128xf32>
    %51 = arith.mulf %45, %50 : vector<32x128xf32>
    %52 = arith.addf %48, %51 : vector<32x128xf32>
    %cst_8 = arith.constant dense<0.000000e+00> : vector<128xf32>
    %53 = vector.multi_reduction <add>, %52, %cst_8 [0] : vector<32x128xf32> to vector<128xf32>
    %54 = vector.shape_cast %53 : vector<128xf32> to vector<1x128xf32>
    %55 = vector.extract_strided_slice %5 {offsets = [64, 0], sizes = [1, 1], strides = [1, 1]} : vector<128x1xf32> to vector<1x1xf32>
    %56 = vector.broadcast %55 : vector<1x1xf32> to vector<1x128xf32>
    %57 = arith.addf %54, %56 : vector<1x128xf32>
    %c0_9 = arith.constant 0 : index
    %c0_10 = arith.constant 0 : index
    %58 = vector.load %arg5[%c0_9, %c0_10] : memref<1x128xf32, #tpu.memory_space<vmem>>, vector<1x128xf32>
    tpu.vector_store %arg5[%c0_9, %c0_10], %57 {strides = array<i32>} : memref<1x128xf32, #tpu.memory_space<vmem>>, vector<1x128xf32>,
    return
  }
  func.func @transform_0(%arg0: i32) -> (i32, i32) {
    %c0_i32 = arith.constant 0 : i32
    %c0_i32_0 = arith.constant 0 : i32
    return %c0_i32, %arg0 : i32, i32
  }
  func.func @transform_1(%arg0: i32) -> (i32, i32) {
    %c0_i32 = arith.constant 0 : i32
    %c0_i32_0 = arith.constant 0 : i32
    %c0_i32_1 = arith.constant 0 : i32
    return %c0_i32, %c0_i32_0 : i32, i32
  }
  func.func @transform_2(%arg0: i32) -> (i32, i32) {
    %c0_i32 = arith.constant 0 : i32
    %c0_i32_0 = arith.constant 0 : i32
    %c0_i32_1 = arith.constant 0 : i32
    return %c0_i32, %c0_i32_0 : i32, i32
  }
  func.func @transform_3(%arg0: i32) -> (i32, i32) {
    %c0_i32 = arith.constant 0 : i32
    %c0_i32_0 = arith.constant 0 : i32
    %c0_i32_1 = arith.constant 0 : i32
    return %c0_i32, %c0_i32_0 : i32, i32
  }
  func.func @transform_4(%arg0: i32) -> (i32, i32) {
    %c0_i32 = arith.constant 0 : i32
    %c0_i32_0 = arith.constant 0 : i32
    return %c0_i32, %arg0 : i32, i32
  }
}

</mosaic_0001>

<llo_original>
// kernel: tpu_custom_call.1
$region0: #{tpu_custom_call.1}
  #allocation0 [shape = 'u32[]', space=smem, size = 0x4, offset = 0x4, fixed_abs, tag = 'smem constant byte address 0x4 - core index']
  #allocation1 [shape = 'u32[144,128]{1,0:T(1,128)}', space=vmem, size = 0x12000, scoped, tag = 'internal scratch']
  %s0 = inlined_call_operand.hbm [shape: f32[4,128], index: 0, kind: input, shape index: {}]
  %s1 = inlined_call_operand.hbm [shape: f32[256,4], index: 1, kind: input, shape index: {}]
  %s2 = inlined_call_operand.hbm [shape: f32[128,32], index: 2, kind: input, shape index: {}]
  %s3 = inlined_call_operand.hbm [shape: f32[128,4], index: 3, kind: input, shape index: {}]
  %s4 = inlined_call_operand.hbm [shape: f32[1,128], index: 4, kind: output, shape index: {}]
  %s5 = sld [smem:[#allocation0]]
  $region42: #{tpu_custom_call.1} parent=0
    _
  %s7 = ssub.s32 1, %s5
  %s8 = scalar_select 0, %s7, %s5
  $region1: #{tpu_custom_call.1} parent=0
    #allocation2 [shape = 'u8[2048]{0}', space=vmem, size = 0x800, scoped, tag = 'input window, operand 0, single buffered']
    #allocation3 [shape = 's32[1]{0}', space=sflag, size = 0x4, scoped, tag = 'scoped memory for tpu_custom_call.1']
    #allocation4 [shape = 's32[1]{0}', space=sflag, size = 0x4, scoped, tag = 'scoped memory for tpu_custom_call.1']
    #allocation5 [shape = 'u8[131072]{0}', space=vmem, size = 0x20000, scoped, tag = 'input window, operand 1, single buffered']
    #allocation6 [shape = 's32[1]{0}', space=sflag, size = 0x4, scoped, tag = 'scoped memory for tpu_custom_call.1']
    #allocation7 [shape = 'u8[65536]{0}', space=vmem, size = 0x10000, scoped, tag = 'input window, operand 2, single buffered']
    #allocation8 [shape = 'u8[65536]{0}', space=vmem, size = 0x10000, scoped, tag = 'input window, operand 3, single buffered']
    #allocation9 [shape = 's32[1]{0}', space=sflag, size = 0x4, scoped, tag = 'scoped memory for tpu_custom_call.1']
    #allocation10 [shape = 'u8[512]{0}', space=vmem, size = 0x400, scoped, tag = 'output window, operand 0, single buffered']
    %9 = vsyncpa [#allocation3], 0
    %10 = vsyncpa [#allocation6], 0
    %11 = vsyncpa [#allocation9], 0
    %12 = vsyncpa [#allocation4], 0
    // Predicated region
    $region2: #{tpu_custom_call.1} parent=1 // pred_check
      _
    $region3: #{tpu_custom_call.1} parent=1 // pred_check_branch
      %14 = sbr.rel (0) target = $region5
    $region4: #{tpu_custom_call.1} parent=1 // pred_region
      %s16 = ssub.s32 64, 64
      %17 = vsyncadd [#allocation3], %s16
      %s19 = sshll.u32 [#allocation2], 4
      %s20 = int_to_ptr.vmem [resolvable:$true] %s19
      %22 = dma.hbm_to_vmem [thread:$0]  %s0, 64, %s20, [#allocation3]
    $region5: #{tpu_custom_call.1} parent=1 // pred_fallthru
      _
    // Predicated region
    $region6: #{tpu_custom_call.1} parent=1 // pred_check
      _
    $region7: #{tpu_custom_call.1} parent=1 // pred_check_branch
      %24 = sbr.rel (0) target = $region9
    $region8: #{tpu_custom_call.1} parent=1 // pred_region
      %s26 = ssub.s32 4096, 4096
      %27 = vsyncadd [#allocation6], %s26
      %s28 = sshll.u32 [#allocation5], 4
      %s29 = int_to_ptr.vmem [resolvable:$true] %s28
      %34 = dma.hbm_to_vmem [thread:$0]  %s1, 4096, %s29, [#allocation6], 128, 128, 8
    $region9: #{tpu_custom_call.1} parent=1 // pred_fallthru
      _
    // Predicated region
    $region10: #{tpu_custom_call.1} parent=1 // pred_check
      _
    $region11: #{tpu_custom_call.1} parent=1 // pred_check_branch
      %36 = sbr.rel (0) target = $region13
    $region12: #{tpu_custom_call.1} parent=1 // pred_region
      %s38 = ssub.s32 2048, 2048
      %39 = vsyncadd [#allocation6], %s38
      %s40 = sshll.u32 [#allocation7], 4
      %s41 = int_to_ptr.vmem [resolvable:$true] %s40
      %46 = dma.hbm_to_vmem [thread:$0]  %s2, 2048, %s41, [#allocation6], 128, 128, 8
    $region13: #{tpu_custom_call.1} parent=1 // pred_fallthru
      _
    // Predicated region
    $region14: #{tpu_custom_call.1} parent=1 // pred_check
      _
    $region15: #{tpu_custom_call.1} parent=1 // pred_check_branch
      %48 = sbr.rel (0) target = $region17
    $region16: #{tpu_custom_call.1} parent=1 // pred_region
      %s50 = ssub.s32 2048, 2048
      %51 = vsyncadd [#allocation9], %s50
      %s52 = sshll.u32 [#allocation8], 4
      %s53 = int_to_ptr.vmem [resolvable:$true] %s52
      %58 = dma.hbm_to_vmem [thread:$0]  %s3, 2048, %s53, [#allocation9], 128, 128, 8
    $region17: #{tpu_custom_call.1} parent=1 // pred_fallthru
      _
    // Predicated region
    $region18: #{tpu_custom_call.1} parent=1 // pred_check
      _
    $region19: #{tpu_custom_call.1} parent=1 // pred_check_branch
      %60 = sbr.rel (0) target = $region21
    $region20: #{tpu_custom_call.1} parent=1 // pred_region
      %61 = dma.done [#allocation3], 64
    $region21: #{tpu_custom_call.1} parent=1 // pred_fallthru
      _
    // Predicated region
    $region22: #{tpu_custom_call.1} parent=1 // pred_check
      _
    $region23: #{tpu_custom_call.1} parent=1 // pred_check_branch
      %63 = sbr.rel (0) target = $region25
    $region24: #{tpu_custom_call.1} parent=1 // pred_region
      %64 = dma.done [#allocation6], 4096
    $region25: #{tpu_custom_call.1} parent=1 // pred_fallthru
      _
    // Predicated region
    $region26: #{tpu_custom_call.1} parent=1 // pred_check
      _
    $region27: #{tpu_custom_call.1} parent=1 // pred_check_branch
      %66 = sbr.rel (0) target = $region29
    $region28: #{tpu_custom_call.1} parent=1 // pred_region
      %67 = dma.done [#allocation6], 2048
    $region29: #{tpu_custom_call.1} parent=1 // pred_fallthru
      _
    // Predicated region
    $region30: #{tpu_custom_call.1} parent=1 // pred_check
      _
    $region31: #{tpu_custom_call.1} parent=1 // pred_check_branch
      %69 = sbr.rel (0) target = $region33
    $region32: #{tpu_custom_call.1} parent=1 // pred_region
      %70 = dma.done [#allocation9], 2048
    $region33: #{tpu_custom_call.1} parent=1 // pred_fallthru
      _
    %v71 = vld [vmem:[#allocation2] sm:$0xf]
    %v72 = vld [vmem:[#allocation8] sm:$0xff]
    %v73 = vld [vmem:[#allocation8 + $0x8] sm:$0xff]
    %v74 = vld [vmem:[#allocation8 + $0x10] sm:$0xff]
    %v75 = vld [vmem:[#allocation8 + $0x18] sm:$0xff]
    %v76 = vld [vmem:[#allocation8 + $0x20] sm:$0xff]
    %v77 = vld [vmem:[#allocation8 + $0x28] sm:$0xff]
    %v78 = vld [vmem:[#allocation8 + $0x30] sm:$0xff]
    %v79 = vld [vmem:[#allocation8 + $0x38] sm:$0xff]
    %v80 = vld [vmem:[#allocation8 + $0x40] sm:$0xff]
    %v81 = vld [vmem:[#allocation8 + $0x48] sm:$0xff]
    %v82 = vld [vmem:[#allocation8 + $0x50] sm:$0xff]
    %v83 = vld [vmem:[#allocation8 + $0x58] sm:$0xff]
    %v84 = vld [vmem:[#allocation8 + $0x60] sm:$0xff]
    %v85 = vld [vmem:[#allocation8 + $0x68] sm:$0xff]
    %v86 = vld [vmem:[#allocation8 + $0x70] sm:$0xff]
    %v87 = vld [vmem:[#allocation8 + $0x78] sm:$0xff]
    %v88 = vld [vmem:[#allocation5] sm:$0xff]
    %v89 = vld [vmem:[#allocation5 + $0x8] sm:$0xff]
    %v90 = vld [vmem:[#allocation5 + $0x10] sm:$0xff]
    %v91 = vld [vmem:[#allocation5 + $0x18] sm:$0xff]
    %v92 = vld [vmem:[#allocation5 + $0x20] sm:$0xff]
    %v93 = vld [vmem:[#allocation5 + $0x28] sm:$0xff]
    %v94 = vld [vmem:[#allocation5 + $0x30] sm:$0xff]
    %v95 = vld [vmem:[#allocation5 + $0x38] sm:$0xff]
    %v96 = vld [vmem:[#allocation5 + $0x40] sm:$0xff]
    %v97 = vld [vmem:[#allocation5 + $0x48] sm:$0xff]
    %v98 = vld [vmem:[#allocation5 + $0x50] sm:$0xff]
    %v99 = vld [vmem:[#allocation5 + $0x58] sm:$0xff]
    %v100 = vld [vmem:[#allocation5 + $0x60] sm:$0xff]
    %v101 = vld [vmem:[#allocation5 + $0x68] sm:$0xff]
    %v102 = vld [vmem:[#allocation5 + $0x70] sm:$0xff]
    %v103 = vld [vmem:[#allocation5 + $0x78] sm:$0xff]
    %v104 = vld [vmem:[#allocation5 + $0x80] sm:$0xff]
    %v105 = vld [vmem:[#allocation5 + $0x88] sm:$0xff]
    %v106 = vld [vmem:[#allocation5 + $0x90] sm:$0xff]
    %v107 = vld [vmem:[#allocation5 + $0x98] sm:$0xff]
    %v108 = vld [vmem:[#allocation5 + $0xa0] sm:$0xff]
    %v109 = vld [vmem:[#allocation5 + $0xa8] sm:$0xff]
    %v110 = vld [vmem:[#allocation5 + $0xb0] sm:$0xff]
    %v111 = vld [vmem:[#allocation5 + $0xb8] sm:$0xff]
    %v112 = vld [vmem:[#allocation5 + $0xc0] sm:$0xff]
    %v113 = vld [vmem:[#allocation5 + $0xc8] sm:$0xff]
    %v114 = vld [vmem:[#allocation5 + $0xd0] sm:$0xff]
    %v115 = vld [vmem:[#allocation5 + $0xd8] sm:$0xff]
    %v116 = vld [vmem:[#allocation5 + $0xe0] sm:$0xff]
    %v117 = vld [vmem:[#allocation5 + $0xe8] sm:$0xff]
    %v118 = vld [vmem:[#allocation5 + $0xf0] sm:$0xff]
    %v119 = vld [vmem:[#allocation5 + $0xf8] sm:$0xff]
    %vm120 = vcmask 31744
    %v122 = vsel %vm120, %v88, 0
    %v125 = vsel %vm120, %v89, 0
    %v128 = vsel %vm120, %v90, 0
    %v131 = vsel %vm120, %v91, 0
    %v134 = vsel %vm120, %v92, 0
    %v137 = vsel %vm120, %v93, 0
    %v140 = vsel %vm120, %v94, 0
    %v143 = vsel %vm120, %v95, 0
    %v146 = vsel %vm120, %v96, 0
    %v149 = vsel %vm120, %v97, 0
    %v152 = vsel %vm120, %v98, 0
    %v155 = vsel %vm120, %v99, 0
    %v158 = vsel %vm120, %v100, 0
    %v161 = vsel %vm120, %v101, 0
    %v164 = vsel %vm120, %v102, 0
    %v167 = vsel %vm120, %v103, 0
    %v170 = vsel %vm120, %v104, 0
    %v173 = vsel %vm120, %v105, 0
    %v176 = vsel %vm120, %v106, 0
    %v179 = vsel %vm120, %v107, 0
    %v182 = vsel %vm120, %v108, 0
    %v185 = vsel %vm120, %v109, 0
    %v188 = vsel %vm120, %v110, 0
    %v191 = vsel %vm120, %v111, 0
    %v194 = vsel %vm120, %v112, 0
    %v197 = vsel %vm120, %v113, 0
    %v200 = vsel %vm120, %v114, 0
    %v203 = vsel %vm120, %v115, 0
    %v206 = vsel %vm120, %v116, 0
    %v209 = vsel %vm120, %v117, 0
    %v212 = vsel %vm120, %v118, 0
    %v215 = vsel %vm120, %v119, 0
    %vm217 = vcmask 1043456
    %v219 = vsel %vm217, %v71, 0
    %221 = vmatprep.subr.mxu0 0.0
    %222 = vmatpush1.msra.mxu0 %v219
    %223 = vmatprep.subr.mxu0 0.0
    %224 = vmatpush1.msra.mxu0 0.0
    %225 = vmatprep.subr.mxu0 0.0
    %226 = vmatpush1.msra.mxu0 0.0
    %227 = vmatprep.subr.mxu0 0.0
    %228 = vmatpush1.msra.mxu0 0.0
    %229 = vmatprep.subr.mxu0 0.0
    %230 = vmatpush1.msra.mxu0 0.0
    %231 = vmatprep.subr.mxu0 0.0
    %232 = vmatpush1.msra.mxu0 0.0
    %233 = vmatprep.subr.mxu0 0.0
    %234 = vmatpush1.msra.mxu0 0.0
    %235 = vmatprep.subr.mxu0 0.0
    %236 = vmatpush1.msra.mxu0 0.0
    %237 = vmatprep.subr.mxu0 0.0
    %238 = vmatpush1.msra.mxu0 0.0
    %239 = vmatprep.subr.mxu0 0.0
    %240 = vmatpush1.msra.mxu0 0.0
    %241 = vmatprep.subr.mxu0 0.0
    %242 = vmatpush1.msra.mxu0 0.0
    %243 = vmatprep.subr.mxu0 0.0
    %244 = vmatpush1.msra.mxu0 0.0
    %245 = vmatprep.subr.mxu0 0.0
    %246 = vmatpush1.msra.mxu0 0.0
    %247 = vmatprep.subr.mxu0 0.0
    %248 = vmatpush1.msra.mxu0 0.0
    %249 = vmatprep.subr.mxu0 0.0
    %250 = vmatpush1.msra.mxu0 0.0
    %251 = vmatprep.subr.mxu0 0.0
    %252 = vmatpush1.msra.mxu0 0.0
    %253 = vmatprep.subr.mxu0 0.0
    %254 = vmatpush1.msra.mxu0 0.0
    %255 = vmatprep.subr.mxu0 0.0
    %256 = vmatpush1.msra.mxu0 0.0
    %257 = vmatprep.subr.mxu0 0.0
    %258 = vmatpush1.msra.mxu0 0.0
    %259 = vmatprep.subr.mxu0 0.0
    %260 = vmatpush1.msra.mxu0 0.0
    %261 = vmatprep.subr.mxu0 0.0
    %262 = vmatpush1.msra.mxu0 0.0
    %263 = vmatprep.subr.mxu0 0.0
    %264 = vmatpush1.msra.mxu0 0.0
    %265 = vmatprep.subr.mxu0 0.0
    %266 = vmatpush1.msra.mxu0 0.0
    %267 = vmatprep.subr.mxu0 0.0
    %268 = vmatpush1.msra.mxu0 0.0
    %269 = vmatprep.subr.mxu0 0.0
    %270 = vmatpush1.msra.mxu0 0.0
    %271 = vmatprep.subr.mxu0 0.0
    %272 = vmatpush1.msra.mxu0 0.0
    %273 = vmatprep.subr.mxu0 0.0
    %274 = vmatpush1.msra.mxu0 0.0
    %275 = vmatprep.subr.mxu0 0.0
    %276 = vmatpush1.msra.mxu0 0.0
    %277 = vmatprep.subr.mxu0 0.0
    %278 = vmatpush1.msra.mxu0 0.0
    %279 = vmatprep.subr.mxu0 0.0
    %280 = vmatpush1.msra.mxu0 0.0
    %281 = vmatprep.subr.mxu0 0.0
    %282 = vmatpush1.msra.mxu0 0.0
    %283 = vmatprep.subr.mxu0 0.0
    %284 = vmatpush1.msra.mxu0 0.0
    %285 = vmatprep.mubr.f32.mxu0 0.0
    %286 = vmatmul.mubr.f32.gmra.mrb[0].mxu0 %v122
    %v287 = vpop.f32.mrb[0].mxu0
    %v288 = vadd.f32 0.0, %v287
    %v289 = vpop.f32.mrb[0].mxu0
    %290 = vmatprep.mubr.f32.mxu0 0.0
    %291 = vmatmul.mubr.f32.gmra.mrb[0].mxu0 %v125
    %v292 = vpop.f32.mrb[0].mxu0
    %v293 = vadd.f32 0.0, %v292
    %v294 = vpop.f32.mrb[0].mxu0
    %295 = vmatprep.mubr.f32.mxu0 0.0
    %296 = vmatmul.mubr.f32.gmra.mrb[0].mxu0 %v128
    %v297 = vpop.f32.mrb[0].mxu0
    %v298 = vadd.f32 0.0, %v297
    %v299 = vpop.f32.mrb[0].mxu0
    %300 = vmatprep.mubr.f32.mxu0 0.0
    %301 = vmatmul.mubr.f32.gmra.mrb[0].mxu0 %v131
    %v302 = vpop.f32.mrb[0].mxu0
    %v303 = vadd.f32 0.0, %v302
    %v304 = vpop.f32.mrb[0].mxu0
    %305 = vmatprep.mubr.f32.mxu0 0.0
    %306 = vmatmul.mubr.f32.gmra.mrb[0].mxu0 %v134
    %v307 = vpop.f32.mrb[0].mxu0
    %v308 = vpop.f32.mrb[0].mxu0
    %309 = vmatprep.mubr.f32.mxu0 0.0
    %310 = vmatmul.mubr.f32.gmra.mrb[0].mxu0 %v137
    %v311 = vpop.f32.mrb[0].mxu0
    %v312 = vpop.f32.mrb[0].mxu0
    %313 = vmatprep.mubr.f32.mxu0 0.0
    %314 = vmatmul.mubr.f32.gmra.mrb[0].mxu0 %v140
    %v315 = vpop.f32.mrb[0].mxu0
    %v316 = vpop.f32.mrb[0].mxu0
    %317 = vmatprep.mubr.f32.mxu0 0.0
    %318 = vmatmul.mubr.f32.gmra.mrb[0].mxu0 %v143
    %v319 = vpop.f32.mrb[0].mxu0
    %v320 = vpop.f32.mrb[0].mxu0
    %321 = vmatprep.mubr.f32.mxu0 0.0
    %322 = vmatmul.mubr.f32.gmra.mrb[0].mxu0 %v146
    %v323 = vpop.f32.mrb[0].mxu0
    %v324 = vadd.f32 0.0, %v323
    %v325 = vpop.f32.mrb[0].mxu0
    %326 = vmatprep.mubr.f32.mxu0 0.0
    %327 = vmatmul.mubr.f32.gmra.mrb[0].mxu0 %v149
    %v328 = vpop.f32.mrb[0].mxu0
    %v329 = vadd.f32 0.0, %v328
    %v330 = vpop.f32.mrb[0].mxu0
    %331 = vmatprep.mubr.f32.mxu0 0.0
    %332 = vmatmul.mubr.f32.gmra.mrb[0].mxu0 %v152
    %v333 = vpop.f32.mrb[0].mxu0
    %v334 = vadd.f32 0.0, %v333
    %v335 = vpop.f32.mrb[0].mxu0
    %336 = vmatprep.mubr.f32.mxu0 0.0
    %337 = vmatmul.mubr.f32.gmra.mrb[0].mxu0 %v155
    %v338 = vpop.f32.mrb[0].mxu0
    %v339 = vadd.f32 0.0, %v338
    %v340 = vpop.f32.mrb[0].mxu0
    %341 = vmatprep.mubr.f32.mxu0 0.0
    %342 = vmatmul.mubr.f32.gmra.mrb[0].mxu0 %v158
    %v343 = vpop.f32.mrb[0].mxu0
    %v344 = vadd.f32 0.0, %v343
    %v345 = vpop.f32.mrb[0].mxu0
    %346 = vmatprep.mubr.f32.mxu0 0.0
    %347 = vmatmul.mubr.f32.gmra.mrb[0].mxu0 %v161
    %v348 = vpop.f32.mrb[0].mxu0
    %v349 = vadd.f32 0.0, %v348
    %v350 = vpop.f32.mrb[0].mxu0
    %351 = vmatprep.mubr.f32.mxu0 0.0
    %352 = vmatmul.mubr.f32.gmra.mrb[0].mxu0 %v164
    %v353 = vpop.f32.mrb[0].mxu0
    %v354 = vadd.f32 0.0, %v353
    %v355 = vpop.f32.mrb[0].mxu0
    %356 = vmatprep.mubr.f32.mxu0 0.0
    %357 = vmatmul.mubr.f32.gmra.mrb[0].mxu0 %v167
    %v358 = vpop.f32.mrb[0].mxu0
    %v359 = vadd.f32 0.0, %v358
    %v360 = vpop.f32.mrb[0].mxu0
    %361 = vmatprep.mubr.f32.mxu0 0.0
    %362 = vmatmul.mubr.f32.gmra.mrb[0].mxu0 %v170
    %v363 = vpop.f32.mrb[0].mxu0
    %v364 = vadd.f32 0.0, %v363
    %v365 = vpop.f32.mrb[0].mxu0
    %366 = vmatprep.mubr.f32.mxu0 0.0
    %367 = vmatmul.mubr.f32.gmra.mrb[0].mxu0 %v173
    %v368 = vpop.f32.mrb[0].mxu0
    %v369 = vadd.f32 0.0, %v368
    %v370 = vpop.f32.mrb[0].mxu0
    %371 = vmatprep.mubr.f32.mxu0 0.0
    %372 = vmatmul.mubr.f32.gmra.mrb[0].mxu0 %v176
    %v373 = vpop.f32.mrb[0].mxu0
    %v374 = vadd.f32 0.0, %v373
    %v375 = vpop.f32.mrb[0].mxu0
    %376 = vmatprep.mubr.f32.mxu0 0.0
    %377 = vmatmul.mubr.f32.gmra.mrb[0].mxu0 %v179
    %v378 = vpop.f32.mrb[0].mxu0
    %v379 = vadd.f32 0.0, %v378
    %v380 = vpop.f32.mrb[0].mxu0
    %381 = vmatprep.mubr.f32.mxu0 0.0
    %382 = vmatmul.mubr.f32.gmra.mrb[0].mxu0 %v182
    %v383 = vpop.f32.mrb[0].mxu0
    %v384 = vadd.f32 0.0, %v383
    %v385 = vpop.f32.mrb[0].mxu0
    %386 = vmatprep.mubr.f32.mxu0 0.0
    %387 = vmatmul.mubr.f32.gmra.mrb[0].mxu0 %v185
    %v388 = vpop.f32.mrb[0].mxu0
    %v389 = vadd.f32 0.0, %v388
    %v390 = vpop.f32.mrb[0].mxu0
    %391 = vmatprep.mubr.f32.mxu0 0.0
    %392 = vmatmul.mubr.f32.gmra.mrb[0].mxu0 %v188
    %v393 = vpop.f32.mrb[0].mxu0
    %v394 = vadd.f32 0.0, %v393
    %v395 = vpop.f32.mrb[0].mxu0
    %396 = vmatprep.mubr.f32.mxu0 0.0
    %397 = vmatmul.mubr.f32.gmra.mrb[0].mxu0 %v191
    %v398 = vpop.f32.mrb[0].mxu0
    %v399 = vadd.f32 0.0, %v398
    %v400 = vpop.f32.mrb[0].mxu0
    %401 = vmatprep.mubr.f32.mxu0 0.0
    %402 = vmatmul.mubr.f32.gmra.mrb[0].mxu0 %v194
    %v403 = vpop.f32.mrb[0].mxu0
    %v404 = vadd.f32 0.0, %v403
    %v405 = vpop.f32.mrb[0].mxu0
    %406 = vmatprep.mubr.f32.mxu0 0.0
    %407 = vmatmul.mubr.f32.gmra.mrb[0].mxu0 %v197
    %v408 = vpop.f32.mrb[0].mxu0
    %v409 = vadd.f32 0.0, %v408
    %v410 = vpop.f32.mrb[0].mxu0
    %411 = vmatprep.mubr.f32.mxu0 0.0
    %412 = vmatmul.mubr.f32.gmra.mrb[0].mxu0 %v200
    %v413 = vpop.f32.mrb[0].mxu0
    %v414 = vadd.f32 0.0, %v413
    %v415 = vpop.f32.mrb[0].mxu0
    %416 = vmatprep.mubr.f32.mxu0 0.0
    %417 = vmatmul.mubr.f32.gmra.mrb[0].mxu0 %v203
    %v418 = vpop.f32.mrb[0].mxu0
    %v419 = vadd.f32 0.0, %v418
    %v420 = vpop.f32.mrb[0].mxu0
    %421 = vmatprep.mubr.f32.mxu0 0.0
    %422 = vmatmul.mubr.f32.gmra.mrb[0].mxu0 %v206
    %v423 = vpop.f32.mrb[0].mxu0
    %v424 = vadd.f32 0.0, %v423
    %v425 = vpop.f32.mrb[0].mxu0
    %426 = vmatprep.mubr.f32.mxu0 0.0
    %427 = vmatmul.mubr.f32.gmra.mrb[0].mxu0 %v209
    %v428 = vpop.f32.mrb[0].mxu0
    %v429 = vadd.f32 0.0, %v428
    %v430 = vpop.f32.mrb[0].mxu0
    %431 = vmatprep.mubr.f32.mxu0 0.0
    %432 = vmatmul.mubr.f32.gmra.mrb[0].mxu0 %v212
    %v433 = vpop.f32.mrb[0].mxu0
    %v434 = vadd.f32 0.0, %v433
    %v435 = vpop.f32.mrb[0].mxu0
    %436 = vmatprep.mubr.f32.mxu0 0.0
    %437 = vmatmul.mubr.f32.gmra.mrb[0].mxu0 %v215
    %v438 = vpop.f32.mrb[0].mxu0
    %v439 = vadd.f32 0.0, %v438
    %v440 = vpop.f32.mrb[0].mxu0
    %441 = vdwg.mxu0
    %443 = vset.pattern.permute.xlu0 0
    %444 = vperm.xlu0 %443, %v72
    %v445 = vpop.permute.xlu0 %444
    %448 = vset.pattern.permute.xlu0 0
    %449 = vperm.xlu0 %448, %v73
    %v450 = vpop.permute.xlu0 %449
    %453 = vset.pattern.permute.xlu0 0
    %454 = vperm.xlu0 %453, %v74
    %v455 = vpop.permute.xlu0 %454
    %458 = vset.pattern.permute.xlu0 0
    %459 = vperm.xlu0 %458, %v75
    %v460 = vpop.permute.xlu0 %459
    %463 = vset.pattern.permute.xlu0 0
    %464 = vperm.xlu0 %463, %v76
    %v465 = vpop.permute.xlu0 %464
    %468 = vset.pattern.permute.xlu0 0
    %469 = vperm.xlu0 %468, %v77
    %v470 = vpop.permute.xlu0 %469
    %473 = vset.pattern.permute.xlu0 0
    %474 = vperm.xlu0 %473, %v78
    %v475 = vpop.permute.xlu0 %474
    %478 = vset.pattern.permute.xlu0 0
    %479 = vperm.xlu0 %478, %v79
    %v480 = vpop.permute.xlu0 %479
    %483 = vset.pattern.permute.xlu0 0
    %484 = vperm.xlu0 %483, %v80
    %v485 = vpop.permute.xlu0 %484
    %488 = vset.pattern.permute.xlu0 0
    %489 = vperm.xlu0 %488, %v81
    %v490 = vpop.permute.xlu0 %489
    %493 = vset.pattern.permute.xlu0 0
    %494 = vperm.xlu0 %493, %v82
    %v495 = vpop.permute.xlu0 %494
    %498 = vset.pattern.permute.xlu0 0
    %499 = vperm.xlu0 %498, %v83
    %v500 = vpop.permute.xlu0 %499
    %503 = vset.pattern.permute.xlu0 0
    %504 = vperm.xlu0 %503, %v84
    %v505 = vpop.permute.xlu0 %504
    %508 = vset.pattern.permute.xlu0 0
    %509 = vperm.xlu0 %508, %v85
    %v510 = vpop.permute.xlu0 %509
    %513 = vset.pattern.permute.xlu0 0
    %514 = vperm.xlu0 %513, %v86
    %v515 = vpop.permute.xlu0 %514
    %518 = vset.pattern.permute.xlu0 0
    %519 = vperm.xlu0 %518, %v87
    %v520 = vpop.permute.xlu0 %519
    %v522 = vadd.f32 %v288, %v445
    %v523 = vadd.f32 %v293, %v450
    %v524 = vadd.f32 %v298, %v455
    %v525 = vadd.f32 %v303, %v460
    %v526 = vadd.f32 %v324, %v485
    %v527 = vadd.f32 %v329, %v490
    %v528 = vadd.f32 %v334, %v495
    %v529 = vadd.f32 %v339, %v500
    %v530 = vadd.f32 %v344, %v505
    %v531 = vadd.f32 %v349, %v510
    %v532 = vadd.f32 %v354, %v515
    %v533 = vadd.f32 %v359, %v520
    %534 = vset.pattern.permute.xlu0 1
    %535 = vperm.xlu0 %534, %v72
    %v536 = vpop.permute.xlu0 %535
    %538 = vset.pattern.permute.xlu0 1
    %539 = vperm.xlu0 %538, %v73
    %v540 = vpop.permute.xlu0 %539
    %542 = vset.pattern.permute.xlu0 1
    %543 = vperm.xlu0 %542, %v74
    %v544 = vpop.permute.xlu0 %543
    %546 = vset.pattern.permute.xlu0 1
    %547 = vperm.xlu0 %546, %v75
    %v548 = vpop.permute.xlu0 %547
    %550 = vset.pattern.permute.xlu0 1
    %551 = vperm.xlu0 %550, %v76
    %v552 = vpop.permute.xlu0 %551
    %554 = vset.pattern.permute.xlu0 1
    %555 = vperm.xlu0 %554, %v77
    %v556 = vpop.permute.xlu0 %555
    %558 = vset.pattern.permute.xlu0 1
    %559 = vperm.xlu0 %558, %v78
    %v560 = vpop.permute.xlu0 %559
    %562 = vset.pattern.permute.xlu0 1
    %563 = vperm.xlu0 %562, %v79
    %v564 = vpop.permute.xlu0 %563
    %566 = vset.pattern.permute.xlu0 1
    %567 = vperm.xlu0 %566, %v80
    %v568 = vpop.permute.xlu0 %567
    %570 = vset.pattern.permute.xlu0 1
    %571 = vperm.xlu0 %570, %v81
    %v572 = vpop.permute.xlu0 %571
    %574 = vset.pattern.permute.xlu0 1
    %575 = vperm.xlu0 %574, %v82
    %v576 = vpop.permute.xlu0 %575
    %578 = vset.pattern.permute.xlu0 1
    %579 = vperm.xlu0 %578, %v83
    %v580 = vpop.permute.xlu0 %579
    %582 = vset.pattern.permute.xlu0 1
    %583 = vperm.xlu0 %582, %v84
    %v584 = vpop.permute.xlu0 %583
    %586 = vset.pattern.permute.xlu0 1
    %587 = vperm.xlu0 %586, %v85
    %v588 = vpop.permute.xlu0 %587
    %590 = vset.pattern.permute.xlu0 1
    %591 = vperm.xlu0 %590, %v86
    %v592 = vpop.permute.xlu0 %591
    %594 = vset.pattern.permute.xlu0 1
    %595 = vperm.xlu0 %594, %v87
    %v596 = vpop.permute.xlu0 %595
    %v598 = vmul.f32 %v522, %v536
    %v599 = vmul.f32 %v523, %v540
    %v600 = vmul.f32 %v524, %v544
    %v601 = vmul.f32 %v525, %v548
    %v602 = vmul.f32 %v526, %v568
    %v603 = vmul.f32 %v527, %v572
    %v604 = vmul.f32 %v528, %v576
    %v605 = vmul.f32 %v529, %v580
    %v606 = vmul.f32 %v530, %v584
    %v607 = vmul.f32 %v531, %v588
    %v608 = vmul.f32 %v532, %v592
    %v609 = vmul.f32 %v533, %v596
    %v610 = vtanh.pop %v598
    %v611 = vtanh.pop %v599
    %v612 = vtanh.pop %v600
    %v613 = vtanh.pop %v601
    %v614 = vtanh.pop %v602
    %v615 = vtanh.pop %v603
    %v616 = vtanh.pop %v604
    %v617 = vtanh.pop %v605
    %v618 = vtanh.pop %v606
    %v619 = vtanh.pop %v607
    %v620 = vtanh.pop %v608
    %v621 = vtanh.pop %v609
    %v622 = vmul.f32 %v610, %v536
    %v623 = vmul.f32 %v611, %v540
    %v624 = vmul.f32 %v612, %v544
    %v625 = vmul.f32 %v613, %v548
    %v626 = vmul.f32 %v614, %v568
    %v627 = vmul.f32 %v615, %v572
    %v628 = vmul.f32 %v616, %v576
    %v629 = vmul.f32 %v617, %v580
    %v630 = vmul.f32 %v618, %v584
    %v631 = vmul.f32 %v619, %v588
    %v632 = vmul.f32 %v620, %v592
    %v633 = vmul.f32 %v621, %v596
    %634 = vset.pattern.permute.xlu0 2
    %635 = vperm.xlu0 %634, %v72
    %v636 = vpop.permute.xlu0 %635
    %638 = vset.pattern.permute.xlu0 2
    %639 = vperm.xlu0 %638, %v73
    %v640 = vpop.permute.xlu0 %639
    %642 = vset.pattern.permute.xlu0 2
    %643 = vperm.xlu0 %642, %v74
    %v644 = vpop.permute.xlu0 %643
    %646 = vset.pattern.permute.xlu0 2
    %647 = vperm.xlu0 %646, %v75
    %v648 = vpop.permute.xlu0 %647
    %650 = vset.pattern.permute.xlu0 2
    %651 = vperm.xlu0 %650, %v76
    %v652 = vpop.permute.xlu0 %651
    %654 = vset.pattern.permute.xlu0 2
    %655 = vperm.xlu0 %654, %v77
    %v656 = vpop.permute.xlu0 %655
    %658 = vset.pattern.permute.xlu0 2
    %659 = vperm.xlu0 %658, %v78
    %v660 = vpop.permute.xlu0 %659
    %662 = vset.pattern.permute.xlu0 2
    %663 = vperm.xlu0 %662, %v79
    %v664 = vpop.permute.xlu0 %663
    %666 = vset.pattern.permute.xlu0 2
    %667 = vperm.xlu0 %666, %v80
    %v668 = vpop.permute.xlu0 %667
    %670 = vset.pattern.permute.xlu0 2
    %671 = vperm.xlu0 %670, %v81
    %v672 = vpop.permute.xlu0 %671
    %674 = vset.pattern.permute.xlu0 2
    %675 = vperm.xlu0 %674, %v82
    %v676 = vpop.permute.xlu0 %675
    %678 = vset.pattern.permute.xlu0 2
    %679 = vperm.xlu0 %678, %v83
    %v680 = vpop.permute.xlu0 %679
    %682 = vset.pattern.permute.xlu0 2
    %683 = vperm.xlu0 %682, %v84
    %v684 = vpop.permute.xlu0 %683
    %686 = vset.pattern.permute.xlu0 2
    %687 = vperm.xlu0 %686, %v85
    %v688 = vpop.permute.xlu0 %687
    %690 = vset.pattern.permute.xlu0 2
    %691 = vperm.xlu0 %690, %v86
    %v692 = vpop.permute.xlu0 %691
    %694 = vset.pattern.permute.xlu0 2
    %695 = vperm.xlu0 %694, %v87
    %v696 = vpop.permute.xlu0 %695
    %v698 = vadd.f32 %v622, %v636
    %v699 = vadd.f32 %v623, %v640
    %v700 = vadd.f32 %v624, %v644
    %v701 = vadd.f32 %v625, %v648
    %v702 = vadd.f32 %v626, %v668
    %v703 = vadd.f32 %v627, %v672
    %v704 = vadd.f32 %v628, %v676
    %v705 = vadd.f32 %v629, %v680
    %v706 = vadd.f32 %v630, %v684
    %v707 = vadd.f32 %v631, %v688
    %v708 = vadd.f32 %v632, %v692
    %v709 = vadd.f32 %v633, %v696
    %v710 = vmul.f32 %v698, %v706
    %v711 = vmul.f32 %v699, %v707
    %v712 = vmul.f32 %v700, %v708
    %v713 = vmul.f32 %v701, %v709
    %v714 = vtanh.pop %v710
    %v715 = vtanh.pop %v711
    %v716 = vtanh.pop %v712
    %v717 = vtanh.pop %v713
    %v718 = vmul.f32 %v702, %v714
    %v719 = vmul.f32 %v703, %v715
    %v720 = vmul.f32 %v704, %v716
    %v721 = vmul.f32 %v705, %v717
    %v722 = vld [vmem:[#allocation7] sm:$0xff]
    %v723 = vld [vmem:[#allocation7 + $0x8] sm:$0xff]
    %v724 = vld [vmem:[#allocation7 + $0x10] sm:$0xff]
    %v725 = vld [vmem:[#allocation7 + $0x18] sm:$0xff]
    %v726 = vld [vmem:[#allocation7 + $0x20] sm:$0xff]
    %v727 = vld [vmem:[#allocation7 + $0x28] sm:$0xff]
    %v728 = vld [vmem:[#allocation7 + $0x30] sm:$0xff]
    %v729 = vld [vmem:[#allocation7 + $0x38] sm:$0xff]
    %v730 = vld [vmem:[#allocation7 + $0x40] sm:$0xff]
    %v731 = vld [vmem:[#allocation7 + $0x48] sm:$0xff]
    %v732 = vld [vmem:[#allocation7 + $0x50] sm:$0xff]
    %v733 = vld [vmem:[#allocation7 + $0x58] sm:$0xff]
    %v734 = vld [vmem:[#allocation7 + $0x60] sm:$0xff]
    %v735 = vld [vmem:[#allocation7 + $0x68] sm:$0xff]
    %v736 = vld [vmem:[#allocation7 + $0x70] sm:$0xff]
    %v737 = vld [vmem:[#allocation7 + $0x78] sm:$0xff]
    %vm738 = vcmask 261120
    %v740 = vsel %vm738, %v722, 0
    %v743 = vsel %vm738, %v723, 0
    %v746 = vsel %vm738, %v724, 0
    %v749 = vsel %vm738, %v725, 0
    %v752 = vsel %vm738, %v726, 0
    %v755 = vsel %vm738, %v727, 0
    %v758 = vsel %vm738, %v728, 0
    %v761 = vsel %vm738, %v729, 0
    %v764 = vsel %vm738, %v730, 0
    %v767 = vsel %vm738, %v731, 0
    %v770 = vsel %vm738, %v732, 0
    %v773 = vsel %vm738, %v733, 0
    %v776 = vsel %vm738, %v734, 0
    %v779 = vsel %vm738, %v735, 0
    %v782 = vsel %vm738, %v736, 0
    %v785 = vsel %vm738, %v737, 0
    %787 = vmatprep.subr.mxu0 0.0
    %788 = vmatpush1.msra.mxu0 %v718
    %789 = vmatprep.subr.mxu0 0.0
    %790 = vmatpush1.msra.mxu0 %v719
    %791 = vmatprep.subr.mxu0 0.0
    %792 = vmatpush1.msra.mxu0 %v720
    %793 = vmatprep.subr.mxu0 0.0
    %794 = vmatpush1.msra.mxu0 %v721
    %795 = vmatprep.subr.mxu0 0.0
    %796 = vmatpush1.msra.mxu0 0.0
    %797 = vmatprep.subr.mxu0 0.0
    %798 = vmatpush1.msra.mxu0 0.0
    %799 = vmatprep.subr.mxu0 0.0
    %800 = vmatpush1.msra.mxu0 0.0
    %801 = vmatprep.subr.mxu0 0.0
    %802 = vmatpush1.msra.mxu0 0.0
    %803 = vmatprep.subr.mxu0 0.0
    %804 = vmatpush1.msra.mxu0 0.0
    %805 = vmatprep.subr.mxu0 0.0
    %806 = vmatpush1.msra.mxu0 0.0
    %807 = vmatprep.subr.mxu0 0.0
    %808 = vmatpush1.msra.mxu0 0.0
    %809 = vmatprep.subr.mxu0 0.0
    %810 = vmatpush1.msra.mxu0 0.0
    %811 = vmatprep.subr.mxu0 0.0
    %812 = vmatpush1.msra.mxu0 0.0
    %813 = vmatprep.subr.mxu0 0.0
    %814 = vmatpush1.msra.mxu0 0.0
    %815 = vmatprep.subr.mxu0 0.0
    %816 = vmatpush1.msra.mxu0 0.0
    %817 = vmatprep.subr.mxu0 0.0
    %818 = vmatpush1.msra.mxu0 0.0
    %819 = vmatprep.subr.mxu0 0.0
    %820 = vmatpush1.msra.mxu0 0.0
    %821 = vmatprep.subr.mxu0 0.0
    %822 = vmatpush1.msra.mxu0 0.0
    %823 = vmatprep.subr.mxu0 0.0
    %824 = vmatpush1.msra.mxu0 0.0
    %825 = vmatprep.subr.mxu0 0.0
    %826 = vmatpush1.msra.mxu0 0.0
    %827 = vmatprep.subr.mxu0 0.0
    %828 = vmatpush1.msra.mxu0 0.0
    %829 = vmatprep.subr.mxu0 0.0
    %830 = vmatpush1.msra.mxu0 0.0
    %831 = vmatprep.subr.mxu0 0.0
    %832 = vmatpush1.msra.mxu0 0.0
    %833 = vmatprep.subr.mxu0 0.0
    %834 = vmatpush1.msra.mxu0 0.0
    %835 = vmatprep.subr.mxu0 0.0
    %836 = vmatpush1.msra.mxu0 0.0
    %837 = vmatprep.subr.mxu0 0.0
    %838 = vmatpush1.msra.mxu0 0.0
    %839 = vmatprep.subr.mxu0 0.0
    %840 = vmatpush1.msra.mxu0 0.0
    %841 = vmatprep.subr.mxu0 0.0
    %842 = vmatpush1.msra.mxu0 0.0
    %843 = vmatprep.subr.mxu0 0.0
    %844 = vmatpush1.msra.mxu0 0.0
    %845 = vmatprep.subr.mxu0 0.0
    %846 = vmatpush1.msra.mxu0 0.0
    %847 = vmatprep.subr.mxu0 0.0
    %848 = vmatpush1.msra.mxu0 0.0
    %849 = vmatprep.subr.mxu0 0.0
    %850 = vmatpush1.msra.mxu0 0.0
    %851 = vmatprep.mubr.f32.mxu0 0.0
    %852 = vmatmul.mubr.f32.gmra.mrb[0].mxu0 %v740
    %v853 = vpop.f32.mrb[0].mxu0
    %v854 = vadd.f32 0.0, %v853
    %v855 = vpop.f32.mrb[0].mxu0
    %856 = vmatprep.mubr.f32.mxu0 0.0
    %857 = vmatmul.mubr.f32.gmra.mrb[0].mxu0 %v743
    %v858 = vpop.f32.mrb[0].mxu0
    %v859 = vadd.f32 0.0, %v858
    %v860 = vpop.f32.mrb[0].mxu0
    %861 = vmatprep.mubr.f32.mxu0 0.0
    %862 = vmatmul.mubr.f32.gmra.mrb[0].mxu0 %v746
    %v863 = vpop.f32.mrb[0].mxu0
    %v864 = vadd.f32 0.0, %v863
    %v865 = vpop.f32.mrb[0].mxu0
    %866 = vmatprep.mubr.f32.mxu0 0.0
    %867 = vmatmul.mubr.f32.gmra.mrb[0].mxu0 %v749
    %v868 = vpop.f32.mrb[0].mxu0
    %v869 = vadd.f32 0.0, %v868
    %v870 = vpop.f32.mrb[0].mxu0
    %871 = vmatprep.mubr.f32.mxu0 0.0
    %872 = vmatmul.mubr.f32.gmra.mrb[0].mxu0 %v752
    %v873 = vpop.f32.mrb[0].mxu0
    %v874 = vadd.f32 0.0, %v873
    %v875 = vpop.f32.mrb[0].mxu0
    %876 = vmatprep.mubr.f32.mxu0 0.0
    %877 = vmatmul.mubr.f32.gmra.mrb[0].mxu0 %v755
    %v878 = vpop.f32.mrb[0].mxu0
    %v879 = vadd.f32 0.0, %v878
    %v880 = vpop.f32.mrb[0].mxu0
    %881 = vmatprep.mubr.f32.mxu0 0.0
    %882 = vmatmul.mubr.f32.gmra.mrb[0].mxu0 %v758
    %v883 = vpop.f32.mrb[0].mxu0
    %v884 = vadd.f32 0.0, %v883
    %v885 = vpop.f32.mrb[0].mxu0
    %886 = vmatprep.mubr.f32.mxu0 0.0
    %887 = vmatmul.mubr.f32.gmra.mrb[0].mxu0 %v761
    %v888 = vpop.f32.mrb[0].mxu0
    %v889 = vadd.f32 0.0, %v888
    %v890 = vpop.f32.mrb[0].mxu0
    %891 = vmatprep.mubr.f32.mxu0 0.0
    %892 = vmatmul.mubr.f32.gmra.mrb[0].mxu0 %v764
    %v893 = vpop.f32.mrb[0].mxu0
    %v894 = vadd.f32 0.0, %v893
    %v895 = vpop.f32.mrb[0].mxu0
    %896 = vmatprep.mubr.f32.mxu0 0.0
    %897 = vmatmul.mubr.f32.gmra.mrb[0].mxu0 %v767
    %v898 = vpop.f32.mrb[0].mxu0
    %v899 = vadd.f32 0.0, %v898
    %v900 = vpop.f32.mrb[0].mxu0
    %901 = vmatprep.mubr.f32.mxu0 0.0
    %902 = vmatmul.mubr.f32.gmra.mrb[0].mxu0 %v770
    %v903 = vpop.f32.mrb[0].mxu0
    %v904 = vadd.f32 0.0, %v903
    %v905 = vpop.f32.mrb[0].mxu0
    %906 = vmatprep.mubr.f32.mxu0 0.0
    %907 = vmatmul.mubr.f32.gmra.mrb[0].mxu0 %v773
    %v908 = vpop.f32.mrb[0].mxu0
    %v909 = vadd.f32 0.0, %v908
    %v910 = vpop.f32.mrb[0].mxu0
    %911 = vmatprep.mubr.f32.mxu0 0.0
    %912 = vmatmul.mubr.f32.gmra.mrb[0].mxu0 %v776
    %v913 = vpop.f32.mrb[0].mxu0
    %v914 = vadd.f32 0.0, %v913
    %v915 = vpop.f32.mrb[0].mxu0
    %916 = vmatprep.mubr.f32.mxu0 0.0
    %917 = vmatmul.mubr.f32.gmra.mrb[0].mxu0 %v779
    %v918 = vpop.f32.mrb[0].mxu0
    %v919 = vadd.f32 0.0, %v918
    %v920 = vpop.f32.mrb[0].mxu0
    %921 = vmatprep.mubr.f32.mxu0 0.0
    %922 = vmatmul.mubr.f32.gmra.mrb[0].mxu0 %v782
    %v923 = vpop.f32.mrb[0].mxu0
    %v924 = vadd.f32 0.0, %v923
    %v925 = vpop.f32.mrb[0].mxu0
    %926 = vmatprep.mubr.f32.mxu0 0.0
    %927 = vmatmul.mubr.f32.gmra.mrb[0].mxu0 %v785
    %v928 = vpop.f32.mrb[0].mxu0
    %v929 = vadd.f32 0.0, %v928
    %v930 = vpop.f32.mrb[0].mxu0
    %931 = vdwg.mxu0
    %v932 = vadd.f32 %v364, %v854
    %v933 = vadd.f32 %v369, %v859
    %v934 = vadd.f32 %v374, %v864
    %v935 = vadd.f32 %v379, %v869
    %v936 = vadd.f32 %v384, %v874
    %v937 = vadd.f32 %v389, %v879
    %v938 = vadd.f32 %v394, %v884
    %v939 = vadd.f32 %v399, %v889
    %v940 = vadd.f32 %v404, %v894
    %v941 = vadd.f32 %v409, %v899
    %v942 = vadd.f32 %v414, %v904
    %v943 = vadd.f32 %v419, %v909
    %v944 = vadd.f32 %v424, %v914
    %v945 = vadd.f32 %v429, %v919
    %v946 = vadd.f32 %v434, %v924
    %v947 = vadd.f32 %v439, %v929
    %v948 = vadd.f32 %v932, %v445
    %v949 = vadd.f32 %v933, %v450
    %v950 = vadd.f32 %v934, %v455
    %v951 = vadd.f32 %v935, %v460
    %v952 = vadd.f32 %v936, %v465
    %v953 = vadd.f32 %v937, %v470
    %v954 = vadd.f32 %v938, %v475
    %v955 = vadd.f32 %v939, %v480
    %v956 = vadd.f32 %v940, %v485
    %v957 = vadd.f32 %v941, %v490
    %v958 = vadd.f32 %v942, %v495
    %v959 = vadd.f32 %v943, %v500
    %v960 = vadd.f32 %v944, %v505
    %v961 = vadd.f32 %v945, %v510
    %v962 = vadd.f32 %v946, %v515
    %v963 = vadd.f32 %v947, %v520
    %v964 = vmul.f32 %v948, %v536
    %v965 = vmul.f32 %v949, %v540
    %v966 = vmul.f32 %v950, %v544
    %v967 = vmul.f32 %v951, %v548
    %v968 = vmul.f32 %v952, %v552
    %v969 = vmul.f32 %v953, %v556
    %v970 = vmul.f32 %v954, %v560
    %v971 = vmul.f32 %v955, %v564
    %v972 = vmul.f32 %v956, %v568
    %v973 = vmul.f32 %v957, %v572
    %v974 = vmul.f32 %v958, %v576
    %v975 = vmul.f32 %v959, %v580
    %v976 = vmul.f32 %v960, %v584
    %v977 = vmul.f32 %v961, %v588
    %v978 = vmul.f32 %v962, %v592
    %v979 = vmul.f32 %v963, %v596
    %v980 = vtanh.pop %v964
    %v981 = vtanh.pop %v965
    %v982 = vtanh.pop %v966
    %v983 = vtanh.pop %v967
    %v984 = vtanh.pop %v968
    %v985 = vtanh.pop %v969
    %v986 = vtanh.pop %v970
    %v987 = vtanh.pop %v971
    %v988 = vtanh.pop %v972
    %v989 = vtanh.pop %v973
    %v990 = vtanh.pop %v974
    %v991 = vtanh.pop %v975
    %v992 = vtanh.pop %v976
    %v993 = vtanh.pop %v977
    %v994 = vtanh.pop %v978
    %v995 = vtanh.pop %v979
    %v996 = vmul.f32 %v980, %v536
    %v997 = vmul.f32 %v981, %v540
    %v998 = vmul.f32 %v982, %v544
    %v999 = vmul.f32 %v983, %v548
    %v1000 = vmul.f32 %v984, %v552
    %v1001 = vmul.f32 %v985, %v556
    %v1002 = vmul.f32 %v986, %v560
    %v1003 = vmul.f32 %v987, %v564
    %v1004 = vmul.f32 %v988, %v568
    %v1005 = vmul.f32 %v989, %v572
    %v1006 = vmul.f32 %v990, %v576
    %v1007 = vmul.f32 %v991, %v580
    %v1008 = vmul.f32 %v992, %v584
    %v1009 = vmul.f32 %v993, %v588
    %v1010 = vmul.f32 %v994, %v592
    %v1011 = vmul.f32 %v995, %v596
    %v1012 = vadd.f32 %v996, %v636
    %v1013 = vadd.f32 %v997, %v640
    %v1014 = vadd.f32 %v998, %v644
    %v1015 = vadd.f32 %v999, %v648
    %v1016 = vadd.f32 %v1000, %v652
    %v1017 = vadd.f32 %v1001, %v656
    %v1018 = vadd.f32 %v1002, %v660
    %v1019 = vadd.f32 %v1003, %v664
    %v1020 = vadd.f32 %v1004, %v668
    %v1021 = vadd.f32 %v1005, %v672
    %v1022 = vadd.f32 %v1006, %v676
    %v1023 = vadd.f32 %v1007, %v680
    %v1024 = vadd.f32 %v1008, %v684
    %v1025 = vadd.f32 %v1009, %v688
    %v1026 = vadd.f32 %v1010, %v692
    %v1027 = vadd.f32 %v1011, %v696
    %v1028 = vmul.f32 %v1016, %v710
    %v1029 = vmul.f32 %v1017, %v711
    %v1030 = vmul.f32 %v1018, %v712
    %v1031 = vmul.f32 %v1019, %v713
    %v1032 = vmul.f32 %v1012, %v1024
    %v1033 = vmul.f32 %v1013, %v1025
    %v1034 = vmul.f32 %v1014, %v1026
    %v1035 = vmul.f32 %v1015, %v1027
    %v1036 = vadd.f32 %v1028, %v1032
    %v1037 = vadd.f32 %v1029, %v1033
    %v1038 = vadd.f32 %v1030, %v1034
    %v1039 = vadd.f32 %v1031, %v1035
    %v1040 = vtanh.pop %v1036
    %v1041 = vtanh.pop %v1037
    %v1042 = vtanh.pop %v1038
    %v1043 = vtanh.pop %v1039
    %v1044 = vmul.f32 %v1020, %v1040
    %v1045 = vmul.f32 %v1021, %v1041
    %v1046 = vmul.f32 %v1022, %v1042
    %v1047 = vmul.f32 %v1023, %v1043
    %1048 = vset.pattern.permute.xlu0 3
    %1049 = vperm.xlu0 %1048, %v72
    %v1050 = vpop.permute.xlu0 %1049
    %1052 = vset.pattern.permute.xlu0 3
    %1053 = vperm.xlu0 %1052, %v73
    %v1054 = vpop.permute.xlu0 %1053
    %1056 = vset.pattern.permute.xlu0 3
    %1057 = vperm.xlu0 %1056, %v74
    %v1058 = vpop.permute.xlu0 %1057
    %1060 = vset.pattern.permute.xlu0 3
    %1061 = vperm.xlu0 %1060, %v75
    %v1062 = vpop.permute.xlu0 %1061
    %v1064 = vmul.f32 %v718, %v1050
    %v1065 = vmul.f32 %v719, %v1054
    %v1066 = vmul.f32 %v720, %v1058
    %v1067 = vmul.f32 %v721, %v1062
    %1068 = vset.pattern.permute.xlu0 3
    %1069 = vperm.xlu0 %1068, %v76
    %v1070 = vpop.permute.xlu0 %1069
    %1072 = vset.pattern.permute.xlu0 3
    %1073 = vperm.xlu0 %1072, %v77
    %v1074 = vpop.permute.xlu0 %1073
    %1076 = vset.pattern.permute.xlu0 3
    %1077 = vperm.xlu0 %1076, %v78
    %v1078 = vpop.permute.xlu0 %1077
    %1080 = vset.pattern.permute.xlu0 3
    %1081 = vperm.xlu0 %1080, %v79
    %v1082 = vpop.permute.xlu0 %1081
    %v1084 = vmul.f32 %v1044, %v1070
    %v1085 = vmul.f32 %v1045, %v1074
    %v1086 = vmul.f32 %v1046, %v1078
    %v1087 = vmul.f32 %v1047, %v1082
    %v1088 = vadd.f32 %v1064, %v1084
    %v1089 = vadd.f32 %v1065, %v1085
    %v1090 = vadd.f32 %v1066, %v1086
    %v1091 = vadd.f32 %v1067, %v1087
    %v1092 = vadd.f32 %v1088, %v1089
    %v1093 = vadd.f32 %v1092, %v1090
    %v1094 = vadd.f32 %v1093, %v1091
    %v1095 = vrot.slane %v1094, 4
    %v1096 = vadd.f32 %v1094, %v1095
    %v1097 = vrot.slane %v1096, 2
    %v1098 = vadd.f32 %v1096, %v1097
    %v1099 = vrot.slane %v1098, 1
    %v1100 = vadd.f32 %v1098, %v1099
    %1101 = vset.pattern.permute.xlu0 3
    %1102 = vperm.xlu0 %1101, %v80
    %v1103 = vpop.permute.xlu0 %1102
    %v1105 = vadd.f32 %v1100, %v1103
    %1106 = vst [vmem:[#allocation10] sm:$0x1] %v1105
    // Predicated region
    $region34: #{tpu_custom_call.1} parent=1 // pred_check
      _
    $region35: #{tpu_custom_call.1} parent=1 // pred_check_branch
      %1108 = sbr.rel (0) target = $region37
    $region36: #{tpu_custom_call.1} parent=1 // pred_region
      %s1110 = ssub.s32 16, 16
      %1111 = vsyncadd [#allocation4], %s1110
      %s1113 = sshll.u32 [#allocation10], 4
      %s1114 = int_to_ptr.vmem [resolvable:$true] %s1113
      %1116 = dma.vmem_to_hbm [thread:$0]  %s1114, 16, %s4, [#allocation4]
    $region37: #{tpu_custom_call.1} parent=1 // pred_fallthru
      _
    // Predicated region
    $region38: #{tpu_custom_call.1} parent=1 // pred_check
      _
    $region39: #{tpu_custom_call.1} parent=1 // pred_check_branch
      %1118 = sbr.rel (0) target = $region41
    $region40: #{tpu_custom_call.1} parent=1 // pred_region
      %1119 = dma.done [#allocation4], 16
    $region41: #{tpu_custom_call.1} parent=1 // pred_fallthru
      _
    %1120 = vsyncpa [#allocation3], 1
    %1121 = vsyncpa [#allocation6], 1
    %1122 = vsyncpa [#allocation9], 1
    %1123 = vsyncpa [#allocation4], 1

</llo_original>
